<compile_context>
chip_gen: v5e
topology: v5e:2x2
jax: 0.10.0
libtpu: 0.0.40
codegen_flags: <defaults>
</compile_context>

<pallas_src>
import functools
import math

import jax
import jax.numpy as jnp
import numpy as np
from jax import lax
from jax.experimental import pallas as pl
from jax.experimental.pallas import tpu as pltpu

_TARGET_INPUT_BLOCK_BYTES = 8 * 1024 * 1024   # ~8 MiB of input per grid step


def _to_2tuple(v):
    if isinstance(v, (tuple, list)):
        assert len(v) == 2
        return (int(v[0]), int(v[1]))
    return (int(v), int(v))


def _pad_same_amount(x: int, kernel_size: int, stride: int, dilation: int = 1) -> int:
    return max((math.ceil(x / stride) - 1) * stride + (kernel_size - 1) * dilation + 1 - x, 0)


def _round_up(x: int, m: int) -> int:
    return ((x + m - 1) // m) * m


def _vmem_budget():
    """Generation-aware VMEM sizing -> (live-buffer budget, scoped limit)."""
    phys = 64 * 1024 * 1024                      # conservative fallback (v7x per-TC)
    try:
        phys = int(pltpu.get_tpu_info().vmem_capacity_bytes)
    except Exception:
        pass
    limit = min((phys * 3) // 4, 96 * 1024 * 1024)   # 96 MiB on 128 MiB chips, 48 MiB on v7x
    budget = limit // 2                              # headroom for double-buffering etc.
    return budget, limit


def _pool_matrix(size, out_size, k, s, pad_lo, dtype):
    """0/1 matrix P (size, out_size): P[i, o] = 1 iff tap j of output o hits input i.

    Taps that land in the SAME zero padding simply have no 1 (they contribute 0);
    with count_include_pad=True the divisor stays k*k, so this is exact.
    """
    p = np.zeros((size, out_size), dtype=np.float32)
    for o in range(out_size):
        for j in range(k):
            i = o * s + j - pad_lo
            if 0 <= i < size:
                p[i, o] = 1.0
    return jnp.asarray(p, dtype=dtype)


def _avgpool_kernel(x_ref, pw_ref, o_ref, tpad_ref, *, kh, sh, pad_top, pad_bot, inv):
    # x_ref:    (CB, H, W)   input block (native layout, lanes = W)
    # pw_ref:   (W, OW)      0/1 W-pooling matrix (SAME pad folded in)
    # o_ref:    (CB, OH, OW) output block
    # tpad_ref: (CB, HP, OW) f32 scratch, HP = H + pad_h (H zero-padding lives only here)
    cb, h, _ = x_ref.shape
    w = pw_ref.shape[0]
    oh, ow = o_ref.shape[1], o_ref.shape[2]

    # --- W direction on the MXU: one matmul does all kw taps + SAME clipping. ---
    # Precision.HIGHEST keeps f32 inputs exact (Pw is exactly representable, so the
    # result matches plain f32 adds); bf16 inputs use native bf16 x bf16 -> f32.
    x2 = x_ref[...].reshape(cb * h, w)
    t = jnp.dot(x2, pw_ref[...],
                preferred_element_type=jnp.float32,
                precision=jax.lax.Precision.HIGHEST)          # (CB*H, OW) f32

    # --- Stage into the H-zero-padded scratch so every H tap spans the full
    #     output row range (no per-tap clipping, no accumulator RMW). ---
    if pad_top:
        tpad_ref[:, :pad_top, :] = jnp.zeros((cb, pad_top, ow), jnp.float32)
    if pad_bot:
        tpad_ref[:, pad_top + h:, :] = jnp.zeros((cb, pad_bot, ow), jnp.float32)
    tpad_ref[:, pad_top:pad_top + h, :] = t.reshape(cb, h, ow)

    # --- H direction: kh sublane-strided reads summed in one expression,
    #     single store per output element. ---
    acc = None
    for i in range(kh):
        rows = pl.ds(i, oh, stride=sh) if sh > 1 else pl.ds(i, oh)
        tap = tpad_ref[:, rows, :]
        acc = tap if acc is None else acc + tap
    o_ref[...] = (acc * jnp.float32(inv)).astype(o_ref.dtype)


def avg_pool2d_same(x, kernel_size, stride=None, ceil_mode=False, count_include_pad=True):
    """TF-'SAME' 2D average pooling of an NCHW tensor (Pallas TPU kernel)."""
    kh, kw = _to_2tuple(kernel_size)
    sh, sw = _to_2tuple(stride) if stride is not None else (kh, kw)

    # TODO(synk): ceil_mode=True and count_include_pad=False paths not implemented
    # (the module defaults False / True are reproduced exactly).
    assert not ceil_mode and count_include_pad

    n, c, h, w = x.shape
    pad_h = _pad_same_amount(h, kh, sh)
    pad_w = _pad_same_amount(w, kw, sw)
    pad_top, pad_bot = pad_h // 2, pad_h - pad_h // 2
    pad_left = pad_w // 2
    hp, wp = h + pad_h, w + pad_w
    oh = (hp - kh) // sh + 1
    ow = (wp - kw) // sw + 1

    nc = n * c
    itemsize = jnp.dtype(x.dtype).itemsize
    budget, vmem_limit = _vmem_budget()

    # Per-channel live VMEM footprint with (8,128)-tile padding:
    # double-buffered in + out blocks plus the f32 staging scratch.
    w_l, ow_l = _round_up(w, 128), _round_up(ow, 128)
    per_c = (2 * _round_up(h, 8) * w_l * itemsize
             + 2 * _round_up(oh, 8) * ow_l * itemsize
             + _round_up(hp, 8) * ow_l * 4)
    cb_budget = max(1, budget // max(per_c, 1))
    cb_target = max(1, _TARGET_INPUT_BLOCK_BYTES // max(h * w * itemsize, 1))
    cb = max(1, min(nc, cb_budget, cb_target))
    # TODO(synk): if even cb == 1 overflows the VMEM budget (extremely large spatial
    # dims), an output-row tiling grid axis with a (kh-1)-row input halo is needed.

    num_blocks = pl.cdiv(nc, cb)

    x3 = x.reshape(nc, h, w)                       # free reshape: no transpose / pad in HBM
    pw = _pool_matrix(w, ow, kw, sw, pad_left, x.dtype)

    kernel = functools.partial(
        _avgpool_kernel, kh=kh, sh=sh, pad_top=pad_top, pad_bot=pad_bot,
        inv=1.0 / (kh * kw))

    cost = pl.CostEstimate(
        flops=int(2 * nc * h * w * ow + nc * oh * ow * kh),
        transcendentals=0,
        bytes_accessed=int(nc * h * w * itemsize + nc * oh * ow * itemsize
                           + w * ow * itemsize),
    )

    out = pl.pallas_call(
        kernel,
        out_shape=jax.ShapeDtypeStruct((nc, oh, ow), x.dtype),
        grid_spec=pltpu.PrefetchScalarGridSpec(
            num_scalar_prefetch=0,
            grid=(num_blocks,),
            in_specs=[pl.BlockSpec((cb, h, w), lambda i: (i, 0, 0)),
                      pl.BlockSpec((w, ow), lambda i: (0, 0))],
            out_specs=pl.BlockSpec((cb, oh, ow), lambda i: (i, 0, 0)),
            scratch_shapes=[pltpu.VMEM((cb, hp, ow), jnp.float32)],
        ),
        compiler_params=pltpu.CompilerParams(
            dimension_semantics=("parallel",),
            vmem_limit_bytes=vmem_limit,
        ),
        cost_estimate=cost,
    )(x3, pw)

    return out.reshape(n, c, oh, ow)


class AvgPool2dSame:
    """JAX/Pallas port of the PyTorch AvgPool2dSame module (no parameters)."""

    def __init__(self, kernel_size, stride=None, ceil_mode=False, count_include_pad=True):
        self.kernel_size = _to_2tuple(kernel_size)
        self.stride = _to_2tuple(stride) if stride is not None else self.kernel_size
        self.ceil_mode = ceil_mode
        self.count_include_pad = count_include_pad

    def __call__(self, x):
        return avg_pool2d_same(
            x, self.kernel_size, self.stride, self.ceil_mode, self.count_include_pad
        )


def _reference(x, kernel_size, stride):
    # Pure-JAX reference: SAME pad + reduce_window mean (count_include_pad=True).
    kh, kw = kernel_size
    sh, sw = stride
    pad_h = _pad_same_amount(x.shape[2], kh, sh)
    pad_w = _pad_same_amount(x.shape[3], kw, sw)
    x_p = jnp.pad(
        x,
        ((0, 0), (0, 0), (pad_h // 2, pad_h - pad_h // 2), (pad_w // 2, pad_w - pad_w // 2)),
    )
    s = lax.reduce_window(
        x_p.astype(jnp.float32), 0.0, lax.add,
        window_dimensions=(1, 1, kh, kw),
        window_strides=(1, 1, sh, sw),
        padding="VALID",
    )
    return (s / (kh * kw)).astype(x.dtype)


if __name__ == "__main__":
    key = jax.random.PRNGKey(0)
    x = jax.random.normal(key, (2, 4, 16, 16), dtype=jnp.float32)

    # (kernel_size, stride): stride-2 SAME (asymmetric bottom/right pad),
    # stride-1 SAME (symmetric pad), and a no-padding case.
    for ks, st in ((3, 2), (3, 1), (2, 2)):
        pool = AvgPool2dSame(kernel_size=ks, stride=st)
        y = jax.block_until_ready(pool(x))
        y_ref = _reference(x, pool.kernel_size, pool.stride)
        assert y.shape == y_ref.shape, (y.shape, y_ref.shape)
        assert jnp.allclose(y, y_ref, atol=1e-5, rtol=1e-5), (ks, st)

    print("KERNEL_OK")
</pallas_src>

<mosaic_0001>
module attributes {stable_mosaic.version = 11 : i64} {
  func.func @_avgpool_kernel(%arg0: i32, %arg1: memref<8x16x16xf32, #tpu.memory_space<vmem>>, %arg2: memref<16x8xf32, #tpu.memory_space<vmem>>, %arg3: memref<8x8x8xf32, #tpu.memory_space<vmem>>, %arg4: memref<8x17x8xf32, #tpu.memory_space<vmem>>) attributes {dimension_semantics = [#tpu.dimension_semantics<parallel>], iteration_bounds = array<i64: 1>, scalar_prefetch = 0 : i64, scratch_operands = 1 : i64, tpu.core_type = #tpu.core_type<tc>, window_params = [{transform_indices = @transform_0, window_bounds = array<i64: 8, 16, 16>}, {pipeline_mode = #tpu.pipeline_mode<synchronous>, transform_indices = @transform_1, window_bounds = array<i64: 16, 8>}, {transform_indices = @transform_2, window_bounds = array<i64: 8, 8, 8>}]} {
    %c0 = arith.constant 0 : index
    %c0_0 = arith.constant 0 : index
    %c0_1 = arith.constant 0 : index
    %0 = vector.load %arg1[%c0, %c0_0, %c0_1] : memref<8x16x16xf32, #tpu.memory_space<vmem>>, vector<8x16x16xf32>
    %1 = vector.shape_cast %0 : vector<8x16x16xf32> to vector<128x16xf32>
    %c0_2 = arith.constant 0 : index
    %c0_3 = arith.constant 0 : index
    %2 = vector.load %arg2[%c0_2, %c0_3] : memref<16x8xf32, #tpu.memory_space<vmem>>, vector<16x8xf32>
    %cst = arith.constant dense<0.000000e+00> : vector<128x8xf32>
    %3 = tpu.matmul %1, %2, %cst {dimension_numbers = #tpu.dot_dimension_numbers<[1], [0], [0], [1], [0, 0, 1, 1], [], []>, precision = #tpu.contract_precision<fp32>} : vector<128x16xf32>, vector<16x8xf32>, vector<128x8xf32> -> vector<128x8xf32>
    %cst_4 = arith.constant 0.000000e+00 : f32
    %4 = vector.broadcast %cst_4 : f32 to vector<8x1x8xf32>
    %c0_5 = arith.constant 0 : index
    %c16 = arith.constant 16 : index
    %c0_6 = arith.constant 0 : index
    %5 = vector.load %arg4[%c0_5, %c16, %c0_6] : memref<8x17x8xf32, #tpu.memory_space<vmem>>, vector<8x1x8xf32>
    tpu.vector_store %arg4[%c0_5, %c16, %c0_6], %4 {strides = array<i32>} : memref<8x17x8xf32, #tpu.memory_space<vmem>>, vector<8x1x8xf32>,
    %6 = vector.shape_cast %3 : vector<128x8xf32> to vector<8x16x8xf32>
    %c0_7 = arith.constant 0 : index
    %c0_8 = arith.constant 0 : index
    %c0_9 = arith.constant 0 : index
    %7 = vector.load %arg4[%c0_7, %c0_8, %c0_9] : memref<8x17x8xf32, #tpu.memory_space<vmem>>, vector<8x16x8xf32>
    tpu.vector_store %arg4[%c0_7, %c0_8, %c0_9], %6 {strides = array<i32>} : memref<8x17x8xf32, #tpu.memory_space<vmem>>, vector<8x16x8xf32>,
    %c0_10 = arith.constant 0 : index
    %c0_11 = arith.constant 0 : index
    %c0_12 = arith.constant 0 : index
    %8 = tpu.strided_load %arg4[%c0_10, %c0_11, %c0_12] {strides = array<i32: 1, 2, 1>} : memref<8x17x8xf32, #tpu.memory_space<vmem>>, vector<8x8x8xf32>
    %c0_13 = arith.constant 0 : index
    %c1 = arith.constant 1 : index
    %c0_14 = arith.constant 0 : index
    %9 = tpu.strided_load %arg4[%c0_13, %c1, %c0_14] {strides = array<i32: 1, 2, 1>} : memref<8x17x8xf32, #tpu.memory_space<vmem>>, vector<8x8x8xf32>
    %10 = arith.addf %8, %9 : vector<8x8x8xf32>
    %c0_15 = arith.constant 0 : index
    %c2 = arith.constant 2 : index
    %c0_16 = arith.constant 0 : index
    %11 = tpu.strided_load %arg4[%c0_15, %c2, %c0_16] {strides = array<i32: 1, 2, 1>} : memref<8x17x8xf32, #tpu.memory_space<vmem>>, vector<8x8x8xf32>
    %12 = arith.addf %10, %11 : vector<8x8x8xf32>
    %cst_17 = arith.constant 0.111111112 : f32
    %13 = vector.broadcast %cst_17 : f32 to vector<8x8x8xf32>
    %14 = arith.mulf %12, %13 : vector<8x8x8xf32>
    %c0_18 = arith.constant 0 : index
    %c0_19 = arith.constant 0 : index
    %c0_20 = arith.constant 0 : index
    %15 = vector.load %arg3[%c0_18, %c0_19, %c0_20] : memref<8x8x8xf32, #tpu.memory_space<vmem>>, vector<8x8x8xf32>
    tpu.vector_store %arg3[%c0_18, %c0_19, %c0_20], %14 {strides = array<i32>} : memref<8x8x8xf32, #tpu.memory_space<vmem>>, vector<8x8x8xf32>,
    return
  }
  func.func @transform_0(%arg0: i32) -> (i32, i32, i32) {
    %c0_i32 = arith.constant 0 : i32
    %c0_i32_0 = arith.constant 0 : i32
    %c0_i32_1 = arith.constant 0 : i32
    return %arg0, %c0_i32, %c0_i32_0 : i32, i32, i32
  }
  func.func @transform_1(%arg0: i32) -> (i32, i32) {
    %c0_i32 = arith.constant 0 : i32
    %c0_i32_0 = arith.constant 0 : i32
    %c0_i32_1 = arith.constant 0 : i32
    return %c0_i32, %c0_i32_0 : i32, i32
  }
  func.func @transform_2(%arg0: i32) -> (i32, i32, i32) {
    %c0_i32 = arith.constant 0 : i32
    %c0_i32_0 = arith.constant 0 : i32
    %c0_i32_1 = arith.constant 0 : i32
    return %arg0, %c0_i32, %c0_i32_0 : i32, i32, i32
  }
}

</mosaic_0001>

<llo_original>
// kernel: tpu_custom_call.1
$region0: #{tpu_custom_call.1}
  #allocation0 [shape = 'u32[]', space=smem, size = 0x4, offset = 0x4, fixed_abs, tag = 'smem constant byte address 0x4 - core index']
  #allocation1 [shape = 'u32[72,128]{1,0:T(1,128)}', space=vmem, size = 0x9000, scoped, tag = 'internal scratch']
  #allocation2 [shape = 'f32[8,17,8]{2,1,0:T(8,128)}', space=vmem, size = 0x18000, scoped, tag = 'scratch operand']
  %s0 = inlined_call_operand.hbm [shape: f32[8,16,16], index: 0, kind: input, shape index: {}]
  %s1 = inlined_call_operand.vmem [shape: f32[16,8], index: 1, kind: input, shape index: {}]
  %s2 = inlined_call_operand.hbm [shape: f32[8,8,8], index: 2, kind: output, shape index: {}]
  %s3 = sld [smem:[#allocation0]]
  $region22: #{tpu_custom_call.1} parent=0
    _
  %s5 = ssub.s32 1, %s3
  %s6 = scalar_select 0, %s5, %s3
  $region1: #{tpu_custom_call.1} parent=0
    #allocation3 [shape = 'u8[65536]{0}', space=vmem, size = 0x10000, scoped, tag = 'input window, operand 0, single buffered']
    #allocation4 [shape = 's32[1]{0}', space=sflag, size = 0x4, scoped, tag = 'scoped memory for tpu_custom_call.1']
    #allocation5 [shape = 's32[1]{0}', space=sflag, size = 0x4, scoped, tag = 'scoped memory for tpu_custom_call.1']
    #allocation6 [shape = 'u8[32768]{0}', space=vmem, size = 0x8000, scoped, tag = 'output window, operand 0, single buffered']
    %7 = vsyncpa [#allocation4], 0
    %8 = vsyncpa [#allocation5], 0
    // Predicated region
    $region2: #{tpu_custom_call.1} parent=1 // pred_check
      _
    $region3: #{tpu_custom_call.1} parent=1 // pred_check_branch
      %10 = sbr.rel (0) target = $region5
    $region4: #{tpu_custom_call.1} parent=1 // pred_region
      %12 = vsyncadd [#allocation4], 0
      %s13 = sshll.u32 %s0, 4
      %s14 = int_to_ptr.hbm [resolvable:$true] %s13
      %s15 = sshll.u32 [#allocation3], 4
      %s16 = int_to_ptr.vmem [resolvable:$true] %s15
      %21 = dma.hbm_to_vmem [thread:$0]  %s14, 2048, %s16, [#allocation4], 128, 128, 8
    $region5: #{tpu_custom_call.1} parent=1 // pred_fallthru
      _
    // Predicated region
    $region6: #{tpu_custom_call.1} parent=1 // pred_check
      _
    $region7: #{tpu_custom_call.1} parent=1 // pred_check_branch
      %23 = sbr.rel (0) target = $region9
    $region8: #{tpu_custom_call.1} parent=1 // pred_region
      _
    $region9: #{tpu_custom_call.1} parent=1 // pred_fallthru
      _
    // Predicated region
    $region10: #{tpu_custom_call.1} parent=1 // pred_check
      _
    $region11: #{tpu_custom_call.1} parent=1 // pred_check_branch
      %25 = sbr.rel (0) target = $region13
    $region12: #{tpu_custom_call.1} parent=1 // pred_region
      %27 = dma.done [#allocation4], 2048
    $region13: #{tpu_custom_call.1} parent=1 // pred_fallthru
      _
    %v28 = vld [vmem:[#allocation3] sm:$0xff]
    %v29 = vld [vmem:[#allocation3 + $0x8] sm:$0xff]
    %v30 = vld [vmem:[#allocation3 + $0x10] sm:$0xff]
    %v31 = vld [vmem:[#allocation3 + $0x18] sm:$0xff]
    %v32 = vld [vmem:[#allocation3 + $0x20] sm:$0xff]
    %v33 = vld [vmem:[#allocation3 + $0x28] sm:$0xff]
    %v34 = vld [vmem:[#allocation3 + $0x30] sm:$0xff]
    %v35 = vld [vmem:[#allocation3 + $0x38] sm:$0xff]
    %v36 = vld [vmem:[#allocation3 + $0x40] sm:$0xff]
    %v37 = vld [vmem:[#allocation3 + $0x48] sm:$0xff]
    %v38 = vld [vmem:[#allocation3 + $0x50] sm:$0xff]
    %v39 = vld [vmem:[#allocation3 + $0x58] sm:$0xff]
    %v40 = vld [vmem:[#allocation3 + $0x60] sm:$0xff]
    %v41 = vld [vmem:[#allocation3 + $0x68] sm:$0xff]
    %v42 = vld [vmem:[#allocation3 + $0x70] sm:$0xff]
    %v43 = vld [vmem:[#allocation3 + $0x78] sm:$0xff]
    %v44 = vld [vmem:[%s1] sm:$0xff]
    %v45 = vld [vmem:[%s1 + $0x8] sm:$0xff]
    %vm46 = vcmask 130048
    %v48 = vsel %vm46, %v28, 0
    %v51 = vsel %vm46, %v29, 0
    %v54 = vsel %vm46, %v30, 0
    %v57 = vsel %vm46, %v31, 0
    %v60 = vsel %vm46, %v32, 0
    %v63 = vsel %vm46, %v33, 0
    %v66 = vsel %vm46, %v34, 0
    %v69 = vsel %vm46, %v35, 0
    %v72 = vsel %vm46, %v36, 0
    %v75 = vsel %vm46, %v37, 0
    %v78 = vsel %vm46, %v38, 0
    %v81 = vsel %vm46, %v39, 0
    %v84 = vsel %vm46, %v40, 0
    %v87 = vsel %vm46, %v41, 0
    %v90 = vsel %vm46, %v42, 0
    %v93 = vsel %vm46, %v43, 0
    %95 = vmatpush.msra.mxu0 0.0
    %96 = vmatpush.msra.mxu0 0.0
    %97 = vmatpush.msra.mxu0 0.0
    %98 = vmatpush.msra.mxu0 0.0
    %99 = vmatpush.msra.mxu0 0.0
    %100 = vmatpush.msra.mxu0 0.0
    %101 = vmatpush.msra.mxu0 0.0
    %102 = vmatpush.msra.mxu0 0.0
    %103 = vmatpush.msra.mxu0 0.0
    %104 = vmatpush.msra.mxu0 0.0
    %105 = vmatpush.msra.mxu0 0.0
    %106 = vmatpush.msra.mxu0 0.0
    %107 = vmatpush.msra.mxu0 0.0
    %108 = vmatpush.msra.mxu0 0.0
    %v109 = vand.u32 %v45, 4294901760
    %110 = vmatpush.msra.mxu0 %v109
    %v111 = vand.u32 %v44, 4294901760
    %112 = vmatpush.msra.mxu0 %v111
    %v113 = vand.u32 %v48, 4294901760
    %v114 = vsub.f32 %v48, %v113
    %v115 = vand.u32 %v114, 4294901760
    %v116 = vsub.f32 %v114, %v115
    %v117 = vand.u32 %v116, 4294901760
    %118 = vmatmul.f32.gmra.mxu0 %v117
    %v119 = vpop.f32.mrf.mxu0
    %v120 = vadd.f32 0.0, %v119
    %v121 = vand.u32 %v51, 4294901760
    %v122 = vsub.f32 %v51, %v121
    %v123 = vand.u32 %v122, 4294901760
    %v124 = vsub.f32 %v122, %v123
    %v125 = vand.u32 %v124, 4294901760
    %126 = vmatmul.f32.gmra.mxu0 %v125
    %v127 = vpop.f32.mrf.mxu0
    %v128 = vadd.f32 0.0, %v127
    %v129 = vand.u32 %v54, 4294901760
    %v130 = vsub.f32 %v54, %v129
    %v131 = vand.u32 %v130, 4294901760
    %v132 = vsub.f32 %v130, %v131
    %v133 = vand.u32 %v132, 4294901760
    %134 = vmatmul.f32.gmra.mxu0 %v133
    %v135 = vpop.f32.mrf.mxu0
    %v136 = vadd.f32 0.0, %v135
    %v137 = vand.u32 %v57, 4294901760
    %v138 = vsub.f32 %v57, %v137
    %v139 = vand.u32 %v138, 4294901760
    %v140 = vsub.f32 %v138, %v139
    %v141 = vand.u32 %v140, 4294901760
    %142 = vmatmul.f32.gmra.mxu0 %v141
    %v143 = vpop.f32.mrf.mxu0
    %v144 = vadd.f32 0.0, %v143
    %v145 = vand.u32 %v60, 4294901760
    %v146 = vsub.f32 %v60, %v145
    %v147 = vand.u32 %v146, 4294901760
    %v148 = vsub.f32 %v146, %v147
    %v149 = vand.u32 %v148, 4294901760
    %150 = vmatmul.f32.gmra.mxu0 %v149
    %v151 = vpop.f32.mrf.mxu0
    %v152 = vadd.f32 0.0, %v151
    %v153 = vand.u32 %v63, 4294901760
    %v154 = vsub.f32 %v63, %v153
    %v155 = vand.u32 %v154, 4294901760
    %v156 = vsub.f32 %v154, %v155
    %v157 = vand.u32 %v156, 4294901760
    %158 = vmatmul.f32.gmra.mxu0 %v157
    %v159 = vpop.f32.mrf.mxu0
    %v160 = vadd.f32 0.0, %v159
    %v161 = vand.u32 %v66, 4294901760
    %v162 = vsub.f32 %v66, %v161
    %v163 = vand.u32 %v162, 4294901760
    %v164 = vsub.f32 %v162, %v163
    %v165 = vand.u32 %v164, 4294901760
    %166 = vmatmul.f32.gmra.mxu0 %v165
    %v167 = vpop.f32.mrf.mxu0
    %v168 = vadd.f32 0.0, %v167
    %v169 = vand.u32 %v69, 4294901760
    %v170 = vsub.f32 %v69, %v169
    %v171 = vand.u32 %v170, 4294901760
    %v172 = vsub.f32 %v170, %v171
    %v173 = vand.u32 %v172, 4294901760
    %174 = vmatmul.f32.gmra.mxu0 %v173
    %v175 = vpop.f32.mrf.mxu0
    %v176 = vadd.f32 0.0, %v175
    %v177 = vand.u32 %v72, 4294901760
    %v178 = vsub.f32 %v72, %v177
    %v179 = vand.u32 %v178, 4294901760
    %v180 = vsub.f32 %v178, %v179
    %v181 = vand.u32 %v180, 4294901760
    %182 = vmatmul.f32.gmra.mxu0 %v181
    %v183 = vpop.f32.mrf.mxu0
    %v184 = vadd.f32 0.0, %v183
    %v185 = vand.u32 %v75, 4294901760
    %v186 = vsub.f32 %v75, %v185
    %v187 = vand.u32 %v186, 4294901760
    %v188 = vsub.f32 %v186, %v187
    %v189 = vand.u32 %v188, 4294901760
    %190 = vmatmul.f32.gmra.mxu0 %v189
    %v191 = vpop.f32.mrf.mxu0
    %v192 = vadd.f32 0.0, %v191
    %v193 = vand.u32 %v78, 4294901760
    %v194 = vsub.f32 %v78, %v193
    %v195 = vand.u32 %v194, 4294901760
    %v196 = vsub.f32 %v194, %v195
    %v197 = vand.u32 %v196, 4294901760
    %198 = vmatmul.f32.gmra.mxu0 %v197
    %v199 = vpop.f32.mrf.mxu0
    %v200 = vadd.f32 0.0, %v199
    %v201 = vand.u32 %v81, 4294901760
    %v202 = vsub.f32 %v81, %v201
    %v203 = vand.u32 %v202, 4294901760
    %v204 = vsub.f32 %v202, %v203
    %v205 = vand.u32 %v204, 4294901760
    %206 = vmatmul.f32.gmra.mxu0 %v205
    %v207 = vpop.f32.mrf.mxu0
    %v208 = vadd.f32 0.0, %v207
    %v209 = vand.u32 %v84, 4294901760
    %v210 = vsub.f32 %v84, %v209
    %v211 = vand.u32 %v210, 4294901760
    %v212 = vsub.f32 %v210, %v211
    %v213 = vand.u32 %v212, 4294901760
    %214 = vmatmul.f32.gmra.mxu0 %v213
    %v215 = vpop.f32.mrf.mxu0
    %v216 = vadd.f32 0.0, %v215
    %v217 = vand.u32 %v87, 4294901760
    %v218 = vsub.f32 %v87, %v217
    %v219 = vand.u32 %v218, 4294901760
    %v220 = vsub.f32 %v218, %v219
    %v221 = vand.u32 %v220, 4294901760
    %222 = vmatmul.f32.gmra.mxu0 %v221
    %v223 = vpop.f32.mrf.mxu0
    %v224 = vadd.f32 0.0, %v223
    %v225 = vand.u32 %v90, 4294901760
    %v226 = vsub.f32 %v90, %v225
    %v227 = vand.u32 %v226, 4294901760
    %v228 = vsub.f32 %v226, %v227
    %v229 = vand.u32 %v228, 4294901760
    %230 = vmatmul.f32.gmra.mxu0 %v229
    %v231 = vpop.f32.mrf.mxu0
    %v232 = vadd.f32 0.0, %v231
    %v233 = vand.u32 %v93, 4294901760
    %v234 = vsub.f32 %v93, %v233
    %v235 = vand.u32 %v234, 4294901760
    %v236 = vsub.f32 %v234, %v235
    %v237 = vand.u32 %v236, 4294901760
    %238 = vmatmul.f32.gmra.mxu0 %v237
    %v239 = vpop.f32.mrf.mxu0
    %v240 = vadd.f32 0.0, %v239
    %241 = vdwg.mxu0
    %242 = vmatpush.msra.mxu0 0.0
    %243 = vmatpush.msra.mxu0 0.0
    %244 = vmatpush.msra.mxu0 0.0
    %245 = vmatpush.msra.mxu0 0.0
    %246 = vmatpush.msra.mxu0 0.0
    %247 = vmatpush.msra.mxu0 0.0
    %248 = vmatpush.msra.mxu0 0.0
    %249 = vmatpush.msra.mxu0 0.0
    %250 = vmatpush.msra.mxu0 0.0
    %251 = vmatpush.msra.mxu0 0.0
    %252 = vmatpush.msra.mxu0 0.0
    %253 = vmatpush.msra.mxu0 0.0
    %254 = vmatpush.msra.mxu0 0.0
    %255 = vmatpush.msra.mxu0 0.0
    %v256 = vand.u32 %v45, 4294901760
    %v257 = vsub.f32 %v45, %v256
    %v258 = vand.u32 %v257, 4294901760
    %v259 = vsub.f32 %v257, %v258
    %v260 = vand.u32 %v259, 4294901760
    %261 = vmatpush.msra.mxu0 %v260
    %v262 = vand.u32 %v44, 4294901760
    %v263 = vsub.f32 %v44, %v262
    %v264 = vand.u32 %v263, 4294901760
    %v265 = vsub.f32 %v263, %v264
    %v266 = vand.u32 %v265, 4294901760
    %267 = vmatpush.msra.mxu0 %v266
    %v268 = vand.u32 %v48, 4294901760
    %269 = vmatmul.f32.gmra.mxu0 %v268
    %v270 = vpop.f32.mrf.mxu0
    %v271 = vadd.f32 %v120, %v270
    %v272 = vand.u32 %v51, 4294901760
    %273 = vmatmul.f32.gmra.mxu0 %v272
    %v274 = vpop.f32.mrf.mxu0
    %v275 = vadd.f32 %v128, %v274
    %v276 = vand.u32 %v54, 4294901760
    %277 = vmatmul.f32.gmra.mxu0 %v276
    %v278 = vpop.f32.mrf.mxu0
    %v279 = vadd.f32 %v136, %v278
    %v280 = vand.u32 %v57, 4294901760
    %281 = vmatmul.f32.gmra.mxu0 %v280
    %v282 = vpop.f32.mrf.mxu0
    %v283 = vadd.f32 %v144, %v282
    %v284 = vand.u32 %v60, 4294901760
    %285 = vmatmul.f32.gmra.mxu0 %v284
    %v286 = vpop.f32.mrf.mxu0
    %v287 = vadd.f32 %v152, %v286
    %v288 = vand.u32 %v63, 4294901760
    %289 = vmatmul.f32.gmra.mxu0 %v288
    %v290 = vpop.f32.mrf.mxu0
    %v291 = vadd.f32 %v160, %v290
    %v292 = vand.u32 %v66, 4294901760
    %293 = vmatmul.f32.gmra.mxu0 %v292
    %v294 = vpop.f32.mrf.mxu0
    %v295 = vadd.f32 %v168, %v294
    %v296 = vand.u32 %v69, 4294901760
    %297 = vmatmul.f32.gmra.mxu0 %v296
    %v298 = vpop.f32.mrf.mxu0
    %v299 = vadd.f32 %v176, %v298
    %v300 = vand.u32 %v72, 4294901760
    %301 = vmatmul.f32.gmra.mxu0 %v300
    %v302 = vpop.f32.mrf.mxu0
    %v303 = vadd.f32 %v184, %v302
    %v304 = vand.u32 %v75, 4294901760
    %305 = vmatmul.f32.gmra.mxu0 %v304
    %v306 = vpop.f32.mrf.mxu0
    %v307 = vadd.f32 %v192, %v306
    %v308 = vand.u32 %v78, 4294901760
    %309 = vmatmul.f32.gmra.mxu0 %v308
    %v310 = vpop.f32.mrf.mxu0
    %v311 = vadd.f32 %v200, %v310
    %v312 = vand.u32 %v81, 4294901760
    %313 = vmatmul.f32.gmra.mxu0 %v312
    %v314 = vpop.f32.mrf.mxu0
    %v315 = vadd.f32 %v208, %v314
    %v316 = vand.u32 %v84, 4294901760
    %317 = vmatmul.f32.gmra.mxu0 %v316
    %v318 = vpop.f32.mrf.mxu0
    %v319 = vadd.f32 %v216, %v318
    %v320 = vand.u32 %v87, 4294901760
    %321 = vmatmul.f32.gmra.mxu0 %v320
    %v322 = vpop.f32.mrf.mxu0
    %v323 = vadd.f32 %v224, %v322
    %v324 = vand.u32 %v90, 4294901760
    %325 = vmatmul.f32.gmra.mxu0 %v324
    %v326 = vpop.f32.mrf.mxu0
    %v327 = vadd.f32 %v232, %v326
    %v328 = vand.u32 %v93, 4294901760
    %329 = vmatmul.f32.gmra.mxu0 %v328
    %v330 = vpop.f32.mrf.mxu0
    %v331 = vadd.f32 %v240, %v330
    %332 = vdwg.mxu0
    %333 = vmatpush.msra.mxu0 0.0
    %334 = vmatpush.msra.mxu0 0.0
    %335 = vmatpush.msra.mxu0 0.0
    %336 = vmatpush.msra.mxu0 0.0
    %337 = vmatpush.msra.mxu0 0.0
    %338 = vmatpush.msra.mxu0 0.0
    %339 = vmatpush.msra.mxu0 0.0
    %340 = vmatpush.msra.mxu0 0.0
    %341 = vmatpush.msra.mxu0 0.0
    %342 = vmatpush.msra.mxu0 0.0
    %343 = vmatpush.msra.mxu0 0.0
    %344 = vmatpush.msra.mxu0 0.0
    %345 = vmatpush.msra.mxu0 0.0
    %346 = vmatpush.msra.mxu0 0.0
    %v347 = vand.u32 %v45, 4294901760
    %v348 = vsub.f32 %v45, %v347
    %349 = vmatpush.msra.mxu0 %v348
    %v350 = vand.u32 %v44, 4294901760
    %v351 = vsub.f32 %v44, %v350
    %352 = vmatpush.msra.mxu0 %v351
    %v353 = vand.u32 %v48, 4294901760
    %v354 = vsub.f32 %v48, %v353
    %355 = vmatmul.f32.gmra.mxu0 %v354
    %v356 = vpop.f32.mrf.mxu0
    %v357 = vadd.f32 %v271, %v356
    %v358 = vand.u32 %v51, 4294901760
    %v359 = vsub.f32 %v51, %v358
    %360 = vmatmul.f32.gmra.mxu0 %v359
    %v361 = vpop.f32.mrf.mxu0
    %v362 = vadd.f32 %v275, %v361
    %v363 = vand.u32 %v54, 4294901760
    %v364 = vsub.f32 %v54, %v363
    %365 = vmatmul.f32.gmra.mxu0 %v364
    %v366 = vpop.f32.mrf.mxu0
    %v367 = vadd.f32 %v279, %v366
    %v368 = vand.u32 %v57, 4294901760
    %v369 = vsub.f32 %v57, %v368
    %370 = vmatmul.f32.gmra.mxu0 %v369
    %v371 = vpop.f32.mrf.mxu0
    %v372 = vadd.f32 %v283, %v371
    %v373 = vand.u32 %v60, 4294901760
    %v374 = vsub.f32 %v60, %v373
    %375 = vmatmul.f32.gmra.mxu0 %v374
    %v376 = vpop.f32.mrf.mxu0
    %v377 = vadd.f32 %v287, %v376
    %v378 = vand.u32 %v63, 4294901760
    %v379 = vsub.f32 %v63, %v378
    %380 = vmatmul.f32.gmra.mxu0 %v379
    %v381 = vpop.f32.mrf.mxu0
    %v382 = vadd.f32 %v291, %v381
    %v383 = vand.u32 %v66, 4294901760
    %v384 = vsub.f32 %v66, %v383
    %385 = vmatmul.f32.gmra.mxu0 %v384
    %v386 = vpop.f32.mrf.mxu0
    %v387 = vadd.f32 %v295, %v386
    %v388 = vand.u32 %v69, 4294901760
    %v389 = vsub.f32 %v69, %v388
    %390 = vmatmul.f32.gmra.mxu0 %v389
    %v391 = vpop.f32.mrf.mxu0
    %v392 = vadd.f32 %v299, %v391
    %v393 = vand.u32 %v72, 4294901760
    %v394 = vsub.f32 %v72, %v393
    %395 = vmatmul.f32.gmra.mxu0 %v394
    %v396 = vpop.f32.mrf.mxu0
    %v397 = vadd.f32 %v303, %v396
    %v398 = vand.u32 %v75, 4294901760
    %v399 = vsub.f32 %v75, %v398
    %400 = vmatmul.f32.gmra.mxu0 %v399
    %v401 = vpop.f32.mrf.mxu0
    %v402 = vadd.f32 %v307, %v401
    %v403 = vand.u32 %v78, 4294901760
    %v404 = vsub.f32 %v78, %v403
    %405 = vmatmul.f32.gmra.mxu0 %v404
    %v406 = vpop.f32.mrf.mxu0
    %v407 = vadd.f32 %v311, %v406
    %v408 = vand.u32 %v81, 4294901760
    %v409 = vsub.f32 %v81, %v408
    %410 = vmatmul.f32.gmra.mxu0 %v409
    %v411 = vpop.f32.mrf.mxu0
    %v412 = vadd.f32 %v315, %v411
    %v413 = vand.u32 %v84, 4294901760
    %v414 = vsub.f32 %v84, %v413
    %415 = vmatmul.f32.gmra.mxu0 %v414
    %v416 = vpop.f32.mrf.mxu0
    %v417 = vadd.f32 %v319, %v416
    %v418 = vand.u32 %v87, 4294901760
    %v419 = vsub.f32 %v87, %v418
    %420 = vmatmul.f32.gmra.mxu0 %v419
    %v421 = vpop.f32.mrf.mxu0
    %v422 = vadd.f32 %v323, %v421
    %v423 = vand.u32 %v90, 4294901760
    %v424 = vsub.f32 %v90, %v423
    %425 = vmatmul.f32.gmra.mxu0 %v424
    %v426 = vpop.f32.mrf.mxu0
    %v427 = vadd.f32 %v327, %v426
    %v428 = vand.u32 %v93, 4294901760
    %v429 = vsub.f32 %v93, %v428
    %430 = vmatmul.f32.gmra.mxu0 %v429
    %v431 = vpop.f32.mrf.mxu0
    %v432 = vadd.f32 %v331, %v431
    %433 = vdwg.mxu0
    %434 = vmatpush.msra.mxu0 0.0
    %435 = vmatpush.msra.mxu0 0.0
    %436 = vmatpush.msra.mxu0 0.0
    %437 = vmatpush.msra.mxu0 0.0
    %438 = vmatpush.msra.mxu0 0.0
    %439 = vmatpush.msra.mxu0 0.0
    %440 = vmatpush.msra.mxu0 0.0
    %441 = vmatpush.msra.mxu0 0.0
    %442 = vmatpush.msra.mxu0 0.0
    %443 = vmatpush.msra.mxu0 0.0
    %444 = vmatpush.msra.mxu0 0.0
    %445 = vmatpush.msra.mxu0 0.0
    %446 = vmatpush.msra.mxu0 0.0
    %447 = vmatpush.msra.mxu0 0.0
    %v448 = vand.u32 %v45, 4294901760
    %449 = vmatpush.msra.mxu0 %v448
    %v450 = vand.u32 %v44, 4294901760
    %451 = vmatpush.msra.mxu0 %v450
    %v452 = vand.u32 %v48, 4294901760
    %v453 = vsub.f32 %v48, %v452
    %v454 = vand.u32 %v453, 4294901760
    %455 = vmatmul.f32.gmra.mxu0 %v454
    %v456 = vpop.f32.mrf.mxu0
    %v457 = vadd.f32 %v357, %v456
    %v458 = vand.u32 %v51, 4294901760
    %v459 = vsub.f32 %v51, %v458
    %v460 = vand.u32 %v459, 4294901760
    %461 = vmatmul.f32.gmra.mxu0 %v460
    %v462 = vpop.f32.mrf.mxu0
    %v463 = vadd.f32 %v362, %v462
    %v464 = vand.u32 %v54, 4294901760
    %v465 = vsub.f32 %v54, %v464
    %v466 = vand.u32 %v465, 4294901760
    %467 = vmatmul.f32.gmra.mxu0 %v466
    %v468 = vpop.f32.mrf.mxu0
    %v469 = vadd.f32 %v367, %v468
    %v470 = vand.u32 %v57, 4294901760
    %v471 = vsub.f32 %v57, %v470
    %v472 = vand.u32 %v471, 4294901760
    %473 = vmatmul.f32.gmra.mxu0 %v472
    %v474 = vpop.f32.mrf.mxu0
    %v475 = vadd.f32 %v372, %v474
    %v476 = vand.u32 %v60, 4294901760
    %v477 = vsub.f32 %v60, %v476
    %v478 = vand.u32 %v477, 4294901760
    %479 = vmatmul.f32.gmra.mxu0 %v478
    %v480 = vpop.f32.mrf.mxu0
    %v481 = vadd.f32 %v377, %v480
    %v482 = vand.u32 %v63, 4294901760
    %v483 = vsub.f32 %v63, %v482
    %v484 = vand.u32 %v483, 4294901760
    %485 = vmatmul.f32.gmra.mxu0 %v484
    %v486 = vpop.f32.mrf.mxu0
    %v487 = vadd.f32 %v382, %v486
    %v488 = vand.u32 %v66, 4294901760
    %v489 = vsub.f32 %v66, %v488
    %v490 = vand.u32 %v489, 4294901760
    %491 = vmatmul.f32.gmra.mxu0 %v490
    %v492 = vpop.f32.mrf.mxu0
    %v493 = vadd.f32 %v387, %v492
    %v494 = vand.u32 %v69, 4294901760
    %v495 = vsub.f32 %v69, %v494
    %v496 = vand.u32 %v495, 4294901760
    %497 = vmatmul.f32.gmra.mxu0 %v496
    %v498 = vpop.f32.mrf.mxu0
    %v499 = vadd.f32 %v392, %v498
    %v500 = vand.u32 %v72, 4294901760
    %v501 = vsub.f32 %v72, %v500
    %v502 = vand.u32 %v501, 4294901760
    %503 = vmatmul.f32.gmra.mxu0 %v502
    %v504 = vpop.f32.mrf.mxu0
    %v505 = vadd.f32 %v397, %v504
    %v506 = vand.u32 %v75, 4294901760
    %v507 = vsub.f32 %v75, %v506
    %v508 = vand.u32 %v507, 4294901760
    %509 = vmatmul.f32.gmra.mxu0 %v508
    %v510 = vpop.f32.mrf.mxu0
    %v511 = vadd.f32 %v402, %v510
    %v512 = vand.u32 %v78, 4294901760
    %v513 = vsub.f32 %v78, %v512
    %v514 = vand.u32 %v513, 4294901760
    %515 = vmatmul.f32.gmra.mxu0 %v514
    %v516 = vpop.f32.mrf.mxu0
    %v517 = vadd.f32 %v407, %v516
    %v518 = vand.u32 %v81, 4294901760
    %v519 = vsub.f32 %v81, %v518
    %v520 = vand.u32 %v519, 4294901760
    %521 = vmatmul.f32.gmra.mxu0 %v520
    %v522 = vpop.f32.mrf.mxu0
    %v523 = vadd.f32 %v412, %v522
    %v524 = vand.u32 %v84, 4294901760
    %v525 = vsub.f32 %v84, %v524
    %v526 = vand.u32 %v525, 4294901760
    %527 = vmatmul.f32.gmra.mxu0 %v526
    %v528 = vpop.f32.mrf.mxu0
    %v529 = vadd.f32 %v417, %v528
    %v530 = vand.u32 %v87, 4294901760
    %v531 = vsub.f32 %v87, %v530
    %v532 = vand.u32 %v531, 4294901760
    %533 = vmatmul.f32.gmra.mxu0 %v532
    %v534 = vpop.f32.mrf.mxu0
    %v535 = vadd.f32 %v422, %v534
    %v536 = vand.u32 %v90, 4294901760
    %v537 = vsub.f32 %v90, %v536
    %v538 = vand.u32 %v537, 4294901760
    %539 = vmatmul.f32.gmra.mxu0 %v538
    %v540 = vpop.f32.mrf.mxu0
    %v541 = vadd.f32 %v427, %v540
    %v542 = vand.u32 %v93, 4294901760
    %v543 = vsub.f32 %v93, %v542
    %v544 = vand.u32 %v543, 4294901760
    %545 = vmatmul.f32.gmra.mxu0 %v544
    %v546 = vpop.f32.mrf.mxu0
    %v547 = vadd.f32 %v432, %v546
    %548 = vdwg.mxu0
    %549 = vmatpush.msra.mxu0 0.0
    %550 = vmatpush.msra.mxu0 0.0
    %551 = vmatpush.msra.mxu0 0.0
    %552 = vmatpush.msra.mxu0 0.0
    %553 = vmatpush.msra.mxu0 0.0
    %554 = vmatpush.msra.mxu0 0.0
    %555 = vmatpush.msra.mxu0 0.0
    %556 = vmatpush.msra.mxu0 0.0
    %557 = vmatpush.msra.mxu0 0.0
    %558 = vmatpush.msra.mxu0 0.0
    %559 = vmatpush.msra.mxu0 0.0
    %560 = vmatpush.msra.mxu0 0.0
    %561 = vmatpush.msra.mxu0 0.0
    %562 = vmatpush.msra.mxu0 0.0
    %v563 = vand.u32 %v45, 4294901760
    %v564 = vsub.f32 %v45, %v563
    %v565 = vand.u32 %v564, 4294901760
    %566 = vmatpush.msra.mxu0 %v565
    %v567 = vand.u32 %v44, 4294901760
    %v568 = vsub.f32 %v44, %v567
    %v569 = vand.u32 %v568, 4294901760
    %570 = vmatpush.msra.mxu0 %v569
    %v571 = vand.u32 %v48, 4294901760
    %572 = vmatmul.f32.gmra.mxu0 %v571
    %v573 = vpop.f32.mrf.mxu0
    %v574 = vadd.f32 %v457, %v573
    %v575 = vand.u32 %v51, 4294901760
    %576 = vmatmul.f32.gmra.mxu0 %v575
    %v577 = vpop.f32.mrf.mxu0
    %v578 = vadd.f32 %v463, %v577
    %v579 = vand.u32 %v54, 4294901760
    %580 = vmatmul.f32.gmra.mxu0 %v579
    %v581 = vpop.f32.mrf.mxu0
    %v582 = vadd.f32 %v469, %v581
    %v583 = vand.u32 %v57, 4294901760
    %584 = vmatmul.f32.gmra.mxu0 %v583
    %v585 = vpop.f32.mrf.mxu0
    %v586 = vadd.f32 %v475, %v585
    %v587 = vand.u32 %v60, 4294901760
    %588 = vmatmul.f32.gmra.mxu0 %v587
    %v589 = vpop.f32.mrf.mxu0
    %v590 = vadd.f32 %v481, %v589
    %v591 = vand.u32 %v63, 4294901760
    %592 = vmatmul.f32.gmra.mxu0 %v591
    %v593 = vpop.f32.mrf.mxu0
    %v594 = vadd.f32 %v487, %v593
    %v595 = vand.u32 %v66, 4294901760
    %596 = vmatmul.f32.gmra.mxu0 %v595
    %v597 = vpop.f32.mrf.mxu0
    %v598 = vadd.f32 %v493, %v597
    %v599 = vand.u32 %v69, 4294901760
    %600 = vmatmul.f32.gmra.mxu0 %v599
    %v601 = vpop.f32.mrf.mxu0
    %v602 = vadd.f32 %v499, %v601
    %v603 = vand.u32 %v72, 4294901760
    %604 = vmatmul.f32.gmra.mxu0 %v603
    %v605 = vpop.f32.mrf.mxu0
    %v606 = vadd.f32 %v505, %v605
    %v607 = vand.u32 %v75, 4294901760
    %608 = vmatmul.f32.gmra.mxu0 %v607
    %v609 = vpop.f32.mrf.mxu0
    %v610 = vadd.f32 %v511, %v609
    %v611 = vand.u32 %v78, 4294901760
    %612 = vmatmul.f32.gmra.mxu0 %v611
    %v613 = vpop.f32.mrf.mxu0
    %v614 = vadd.f32 %v517, %v613
    %v615 = vand.u32 %v81, 4294901760
    %616 = vmatmul.f32.gmra.mxu0 %v615
    %v617 = vpop.f32.mrf.mxu0
    %v618 = vadd.f32 %v523, %v617
    %v619 = vand.u32 %v84, 4294901760
    %620 = vmatmul.f32.gmra.mxu0 %v619
    %v621 = vpop.f32.mrf.mxu0
    %v622 = vadd.f32 %v529, %v621
    %v623 = vand.u32 %v87, 4294901760
    %624 = vmatmul.f32.gmra.mxu0 %v623
    %v625 = vpop.f32.mrf.mxu0
    %v626 = vadd.f32 %v535, %v625
    %v627 = vand.u32 %v90, 4294901760
    %628 = vmatmul.f32.gmra.mxu0 %v627
    %v629 = vpop.f32.mrf.mxu0
    %v630 = vadd.f32 %v541, %v629
    %v631 = vand.u32 %v93, 4294901760
    %632 = vmatmul.f32.gmra.mxu0 %v631
    %v633 = vpop.f32.mrf.mxu0
    %v634 = vadd.f32 %v547, %v633
    %635 = vdwg.mxu0
    %636 = vmatpush.msra.mxu0 0.0
    %637 = vmatpush.msra.mxu0 0.0
    %638 = vmatpush.msra.mxu0 0.0
    %639 = vmatpush.msra.mxu0 0.0
    %640 = vmatpush.msra.mxu0 0.0
    %641 = vmatpush.msra.mxu0 0.0
    %642 = vmatpush.msra.mxu0 0.0
    %643 = vmatpush.msra.mxu0 0.0
    %644 = vmatpush.msra.mxu0 0.0
    %645 = vmatpush.msra.mxu0 0.0
    %646 = vmatpush.msra.mxu0 0.0
    %647 = vmatpush.msra.mxu0 0.0
    %648 = vmatpush.msra.mxu0 0.0
    %649 = vmatpush.msra.mxu0 0.0
    %v650 = vand.u32 %v45, 4294901760
    %651 = vmatpush.msra.mxu0 %v650
    %v652 = vand.u32 %v44, 4294901760
    %653 = vmatpush.msra.mxu0 %v652
    %v654 = vand.u32 %v48, 4294901760
    %655 = vmatmul.f32.gmra.mxu0 %v654
    %v656 = vpop.f32.mrf.mxu0
    %v657 = vadd.f32 %v574, %v656
    %v658 = vand.u32 %v51, 4294901760
    %659 = vmatmul.f32.gmra.mxu0 %v658
    %v660 = vpop.f32.mrf.mxu0
    %v661 = vadd.f32 %v578, %v660
    %v662 = vand.u32 %v54, 4294901760
    %663 = vmatmul.f32.gmra.mxu0 %v662
    %v664 = vpop.f32.mrf.mxu0
    %v665 = vadd.f32 %v582, %v664
    %v666 = vand.u32 %v57, 4294901760
    %667 = vmatmul.f32.gmra.mxu0 %v666
    %v668 = vpop.f32.mrf.mxu0
    %v669 = vadd.f32 %v586, %v668
    %v670 = vand.u32 %v60, 4294901760
    %671 = vmatmul.f32.gmra.mxu0 %v670
    %v672 = vpop.f32.mrf.mxu0
    %v673 = vadd.f32 %v590, %v672
    %v674 = vand.u32 %v63, 4294901760
    %675 = vmatmul.f32.gmra.mxu0 %v674
    %v676 = vpop.f32.mrf.mxu0
    %v677 = vadd.f32 %v594, %v676
    %v678 = vand.u32 %v66, 4294901760
    %679 = vmatmul.f32.gmra.mxu0 %v678
    %v680 = vpop.f32.mrf.mxu0
    %v681 = vadd.f32 %v598, %v680
    %v682 = vand.u32 %v69, 4294901760
    %683 = vmatmul.f32.gmra.mxu0 %v682
    %v684 = vpop.f32.mrf.mxu0
    %v685 = vadd.f32 %v602, %v684
    %v686 = vand.u32 %v72, 4294901760
    %687 = vmatmul.f32.gmra.mxu0 %v686
    %v688 = vpop.f32.mrf.mxu0
    %v689 = vadd.f32 %v606, %v688
    %v690 = vand.u32 %v75, 4294901760
    %691 = vmatmul.f32.gmra.mxu0 %v690
    %v692 = vpop.f32.mrf.mxu0
    %v693 = vadd.f32 %v610, %v692
    %v694 = vand.u32 %v78, 4294901760
    %695 = vmatmul.f32.gmra.mxu0 %v694
    %v696 = vpop.f32.mrf.mxu0
    %v697 = vadd.f32 %v614, %v696
    %v698 = vand.u32 %v81, 4294901760
    %699 = vmatmul.f32.gmra.mxu0 %v698
    %v700 = vpop.f32.mrf.mxu0
    %v701 = vadd.f32 %v618, %v700
    %v702 = vand.u32 %v84, 4294901760
    %703 = vmatmul.f32.gmra.mxu0 %v702
    %v704 = vpop.f32.mrf.mxu0
    %v705 = vadd.f32 %v622, %v704
    %v706 = vand.u32 %v87, 4294901760
    %707 = vmatmul.f32.gmra.mxu0 %v706
    %v708 = vpop.f32.mrf.mxu0
    %v709 = vadd.f32 %v626, %v708
    %v710 = vand.u32 %v90, 4294901760
    %711 = vmatmul.f32.gmra.mxu0 %v710
    %v712 = vpop.f32.mrf.mxu0
    %v713 = vadd.f32 %v630, %v712
    %v714 = vand.u32 %v93, 4294901760
    %715 = vmatmul.f32.gmra.mxu0 %v714
    %v716 = vpop.f32.mrf.mxu0
    %v717 = vadd.f32 %v634, %v716
    %718 = vdwg.mxu0
    %vm719 = vcmask 57344
    %720 = vst.msk [vmem:[#allocation2 + $0x10] sm:$0x1] %vm719, 0.0
    %721 = vst.msk [vmem:[#allocation2 + $0x28] sm:$0x1] %vm719, 0.0
    %722 = vst.msk [vmem:[#allocation2 + $0x40] sm:$0x1] %vm719, 0.0
    %723 = vst.msk [vmem:[#allocation2 + $0x58] sm:$0x1] %vm719, 0.0
    %724 = vst.msk [vmem:[#allocation2 + $0x70] sm:$0x1] %vm719, 0.0
    %725 = vst.msk [vmem:[#allocation2 + $0x88] sm:$0x1] %vm719, 0.0
    %726 = vst.msk [vmem:[#allocation2 + $0xa0] sm:$0x1] %vm719, 0.0
    %727 = vst.msk [vmem:[#allocation2 + $0xb8] sm:$0x1] %vm719, 0.0
    %vm728 = vcmask 64512
    %729 = vst.msk [vmem:[#allocation2] sm:$0xff] %vm728, %v657
    %730 = vst.msk [vmem:[#allocation2 + $0x8] sm:$0xff] %vm728, %v661
    %731 = vst.msk [vmem:[#allocation2 + $0x18] sm:$0xff] %vm728, %v665
    %732 = vst.msk [vmem:[#allocation2 + $0x20] sm:$0xff] %vm728, %v669
    %733 = vst.msk [vmem:[#allocation2 + $0x30] sm:$0xff] %vm728, %v673
    %734 = vst.msk [vmem:[#allocation2 + $0x38] sm:$0xff] %vm728, %v677
    %735 = vst.msk [vmem:[#allocation2 + $0x48] sm:$0xff] %vm728, %v681
    %736 = vst.msk [vmem:[#allocation2 + $0x50] sm:$0xff] %vm728, %v685
    %737 = vst.msk [vmem:[#allocation2 + $0x60] sm:$0xff] %vm728, %v689
    %738 = vst.msk [vmem:[#allocation2 + $0x68] sm:$0xff] %vm728, %v693
    %739 = vst.msk [vmem:[#allocation2 + $0x78] sm:$0xff] %vm728, %v697
    %740 = vst.msk [vmem:[#allocation2 + $0x80] sm:$0xff] %vm728, %v701
    %741 = vst.msk [vmem:[#allocation2 + $0x90] sm:$0xff] %vm728, %v705
    %742 = vst.msk [vmem:[#allocation2 + $0x98] sm:$0xff] %vm728, %v709
    %743 = vst.msk [vmem:[#allocation2 + $0xa8] sm:$0xff] %vm728, %v713
    %744 = vst.msk [vmem:[#allocation2 + $0xb0] sm:$0xff] %vm728, %v717
    %v745 = vld [vmem:[#allocation2] ss:$2 sm:$0xff]
    %s746 = scalar_lea.vmem [#allocation2], 24
    %v747 = vld [vmem:[%s746] ss:$2 sm:$0xff]
    %s748 = scalar_lea.vmem [#allocation2], 48
    %v749 = vld [vmem:[%s748] ss:$2 sm:$0xff]
    %s750 = scalar_lea.vmem [#allocation2], 72
    %v751 = vld [vmem:[%s750] ss:$2 sm:$0xff]
    %s752 = scalar_lea.vmem [#allocation2], 96
    %v753 = vld [vmem:[%s752] ss:$2 sm:$0xff]
    %s754 = scalar_lea.vmem [#allocation2], 120
    %v755 = vld [vmem:[%s754] ss:$2 sm:$0xff]
    %s756 = scalar_lea.vmem [#allocation2], 144
    %v757 = vld [vmem:[%s756] ss:$2 sm:$0xff]
    %s758 = scalar_lea.vmem [#allocation2], 168
    %v759 = vld [vmem:[%s758] ss:$2 sm:$0xff]
    %s760 = scalar_lea.vmem [#allocation2], 1
    %v761 = vld [vmem:[%s760] ss:$2 sm:$0xff]
    %s762 = scalar_lea.vmem [#allocation2], 25
    %v763 = vld [vmem:[%s762] ss:$2 sm:$0xff]
    %s764 = scalar_lea.vmem [#allocation2], 49
    %v765 = vld [vmem:[%s764] ss:$2 sm:$0xff]
    %s766 = scalar_lea.vmem [#allocation2], 73
    %v767 = vld [vmem:[%s766] ss:$2 sm:$0xff]
    %s768 = scalar_lea.vmem [#allocation2], 97
    %v769 = vld [vmem:[%s768] ss:$2 sm:$0xff]
    %s770 = scalar_lea.vmem [#allocation2], 121
    %v771 = vld [vmem:[%s770] ss:$2 sm:$0xff]
    %s772 = scalar_lea.vmem [#allocation2], 145
    %v773 = vld [vmem:[%s772] ss:$2 sm:$0xff]
    %s774 = scalar_lea.vmem [#allocation2], 169
    %v775 = vld [vmem:[%s774] ss:$2 sm:$0xff]
    %v776 = vadd.f32 %v745, %v761
    %v777 = vadd.f32 %v747, %v763
    %v778 = vadd.f32 %v749, %v765
    %v779 = vadd.f32 %v751, %v767
    %v780 = vadd.f32 %v753, %v769
    %v781 = vadd.f32 %v755, %v771
    %v782 = vadd.f32 %v757, %v773
    %v783 = vadd.f32 %v759, %v775
    %s784 = scalar_lea.vmem [#allocation2], 2
    %v785 = vld [vmem:[%s784] ss:$2 sm:$0xff]
    %s786 = scalar_lea.vmem [#allocation2], 26
    %v787 = vld [vmem:[%s786] ss:$2 sm:$0xff]
    %s788 = scalar_lea.vmem [#allocation2], 50
    %v789 = vld [vmem:[%s788] ss:$2 sm:$0xff]
    %s790 = scalar_lea.vmem [#allocation2], 74
    %v791 = vld [vmem:[%s790] ss:$2 sm:$0xff]
    %s792 = scalar_lea.vmem [#allocation2], 98
    %v793 = vld [vmem:[%s792] ss:$2 sm:$0xff]
    %s794 = scalar_lea.vmem [#allocation2], 122
    %v795 = vld [vmem:[%s794] ss:$2 sm:$0xff]
    %s796 = scalar_lea.vmem [#allocation2], 146
    %v797 = vld [vmem:[%s796] ss:$2 sm:$0xff]
    %s798 = scalar_lea.vmem [#allocation2], 170
    %v799 = vld [vmem:[%s798] ss:$2 sm:$0xff]
    %v800 = vadd.f32 %v776, %v785
    %v801 = vadd.f32 %v777, %v787
    %v802 = vadd.f32 %v778, %v789
    %v803 = vadd.f32 %v779, %v791
    %v804 = vadd.f32 %v780, %v793
    %v805 = vadd.f32 %v781, %v795
    %v806 = vadd.f32 %v782, %v797
    %v807 = vadd.f32 %v783, %v799
    %v808 = vmul.f32 %v800, 0.11111111
    %v809 = vmul.f32 %v801, 0.11111111
    %v810 = vmul.f32 %v802, 0.11111111
    %v811 = vmul.f32 %v803, 0.11111111
    %v812 = vmul.f32 %v804, 0.11111111
    %v813 = vmul.f32 %v805, 0.11111111
    %v814 = vmul.f32 %v806, 0.11111111
    %v815 = vmul.f32 %v807, 0.11111111
    %816 = vst.msk [vmem:[#allocation6] sm:$0xff] %vm728, %v808
    %817 = vst.msk [vmem:[#allocation6 + $0x8] sm:$0xff] %vm728, %v809
    %818 = vst.msk [vmem:[#allocation6 + $0x10] sm:$0xff] %vm728, %v810
    %819 = vst.msk [vmem:[#allocation6 + $0x18] sm:$0xff] %vm728, %v811
    %820 = vst.msk [vmem:[#allocation6 + $0x20] sm:$0xff] %vm728, %v812
    %821 = vst.msk [vmem:[#allocation6 + $0x28] sm:$0xff] %vm728, %v813
    %822 = vst.msk [vmem:[#allocation6 + $0x30] sm:$0xff] %vm728, %v814
    %823 = vst.msk [vmem:[#allocation6 + $0x38] sm:$0xff] %vm728, %v815
    // Predicated region
    $region14: #{tpu_custom_call.1} parent=1 // pred_check
      _
    $region15: #{tpu_custom_call.1} parent=1 // pred_check_branch
      %825 = sbr.rel (0) target = $region17
    $region16: #{tpu_custom_call.1} parent=1 // pred_region
      %827 = vsyncadd [#allocation5], 0
      %s828 = sshll.u32 [#allocation6], 4
      %s829 = int_to_ptr.vmem [resolvable:$true] %s828
      %s830 = sshll.u32 %s2, 4
      %s831 = int_to_ptr.hbm [resolvable:$true] %s830
      %836 = dma.vmem_to_hbm [thread:$0]  %s829, 1024, %s831, [#allocation5], 128, 128, 8
    $region17: #{tpu_custom_call.1} parent=1 // pred_fallthru
      _
    // Predicated region
    $region18: #{tpu_custom_call.1} parent=1 // pred_check
      _
    $region19: #{tpu_custom_call.1} parent=1 // pred_check_branch
      %838 = sbr.rel (0) target = $region21
    $region20: #{tpu_custom_call.1} parent=1 // pred_region
      %840 = dma.done [#allocation5], 1024
    $region21: #{tpu_custom_call.1} parent=1 // pred_fallthru
      _
    %841 = vsyncpa [#allocation4], 1
    %842 = vsyncpa [#allocation5], 1

</llo_original>
